<compile_context>
chip_gen: v7x
topology: tpu7x:2x2x1
jax: 0.10.0
libtpu: 0.0.40
codegen_flags: <defaults>
</compile_context>

<pallas_src>
import functools

import jax
import jax.numpy as jnp
from jax.experimental import pallas as pl
from jax.experimental.pallas import tpu as pltpu

LANE = 128
SUBLANE = 8


def _round_up(v, m):
    return (v + m - 1) // m * m


def _cdiv(a, b):
    return -(-a // b)


def _resident_spec(shape):
    """Constant-index (VMEM-resident) spec; single-buffered when supported."""
    index_map = lambda i: (0, 0)
    try:
        return pl.BlockSpec(shape, index_map, pipeline_mode=pl.Buffered(1))
    except Exception:  # older jax without pipeline_mode / Buffered
        return pl.BlockSpec(shape, index_map)


def _decoder_kernel(n_linear, compute_dtype, x_ref, *refs):
    """refs = (w0, b0, w1, b1, ..., w_{n-1}, b_{n-1}, out_ref)."""
    out_ref = refs[-1]
    h = x_ref[...]  # bf16 activations
    for layer in range(n_linear):
        w = refs[2 * layer][...]
        b = refs[2 * layer + 1][...]
        acc = jnp.dot(h, w, preferred_element_type=jnp.float32) + b
        if layer < n_linear - 1:
            # Cast straight back to bf16: halves live-intermediate pressure.
            h = jnp.maximum(acc, 0.0).astype(compute_dtype)
        else:
            out_ref[...] = acc.astype(out_ref.dtype)


def prepare_params(params, compute_dtype=jnp.bfloat16):
    """Pad + cast weights ONCE to the lane-dense bf16 layout the kernel expects.

    params: list of (W (in, out) f32, b (out,) f32) per Linear.
    Returns a tuple of (W_padded bf16 (in_p, out_p), b_padded f32 (1, out_p)).
    Zero padding is mathematically exact for Linear(+ReLU) chains.
    """
    prev_p = _round_up(params[0][0].shape[0], LANE)
    padded = []
    for (w, b) in params:
        k, n = w.shape
        n_p = _round_up(n, LANE)
        w_p = jnp.pad(w.astype(compute_dtype), ((0, prev_p - k), (0, n_p - n)))
        b_p = jnp.pad(b.astype(jnp.float32), (0, n_p - n)).reshape(1, n_p)
        padded.append((w_p, b_p))
        prev_p = n_p
    return tuple(padded)


@functools.partial(jax.jit,
                   static_argnames=("out_dim", "compute_dtype", "tile_b"))
def decoder_forward(x, padded_params, out_dim, *,
                    compute_dtype=jnp.bfloat16, tile_b=None):
    """x: (B, latent_dim) f32; padded_params: output of prepare_params()."""
    batch, latent_dim = x.shape
    n_linear = len(padded_params)
    item = jnp.dtype(compute_dtype).itemsize

    in_p = padded_params[0][0].shape[0]
    assert in_p == _round_up(latent_dim, LANE), "params/x latent_dim mismatch"
    out_p = padded_params[-1][0].shape[1]

    # ---- resident parameter footprint (single-buffered) ---------------------
    weight_bytes = 0
    bias_bytes = 0
    max_np = in_p
    for (w_p, b_p) in padded_params:
        weight_bytes += w_p.size * item
        bias_bytes += b_p.size * 4
        max_np = max(max_np, w_p.shape[1])

    # ---- generation-aware VMEM budget ---------------------------------------
    try:
        vmem_cap = int(pltpu.get_tpu_info().vmem_capacity_bytes)
    except Exception:
        vmem_cap = 64 << 20  # conservative fallback (v7x per-core VMEM)
    budget = int(vmem_cap * 0.85)

    def vmem_estimate(tb):
        return (weight_bytes + bias_bytes          # params: single-buffered
                + 2 * tb * in_p * item             # double-buffered input tile
                + 2 * tb * out_p * 4               # double-buffered output tile
                + 3 * tb * max_np * 4)             # live-intermediate headroom

    # ---- batch tiling --------------------------------------------------------
    if tile_b is None:
        n_tiles = max(1, _cdiv(batch, 512))        # target <= 512-row tiles
        if n_tiles == 1 and batch > SUBLANE:
            n_tiles = 2                            # >= 2 grid steps -> megacore
        tile_b = _round_up(_cdiv(batch, n_tiles), SUBLANE)
    while tile_b > SUBLANE and vmem_estimate(tile_b) > budget:
        tile_b = _round_up(_cdiv(tile_b, 2), SUBLANE)

    if vmem_estimate(SUBLANE) > budget:
        # TODO(synk): stream K/N weight tiles from HBM (pl.ANY weights +
        # pltpu.emit_pipeline) instead of whole-weight residency; fail loudly
        # rather than silently clamping the VMEM budget below requirement.
        raise NotImplementedError(
            "Decoder weights do not fit in VMEM; K-tiled streaming path needed.")

    b_pad = _round_up(batch, tile_b)
    grid = (b_pad // tile_b,)

    # ---- inputs / specs ------------------------------------------------------
    x_p = jnp.pad(x.astype(compute_dtype),
                  ((0, b_pad - batch), (0, in_p - latent_dim)))

    flat_inputs = [x_p]
    in_specs = [pl.BlockSpec((tile_b, in_p), lambda i: (i, 0))]
    flops = 0
    for (w_p, b_p) in padded_params:
        flat_inputs += [w_p, b_p]
        in_specs.append(_resident_spec(w_p.shape))
        in_specs.append(_resident_spec(b_p.shape))
        flops += 2 * b_pad * w_p.shape[0] * w_p.shape[1]

    bytes_accessed = (x_p.size * item + weight_bytes + bias_bytes
                      + b_pad * out_p * 4)

    vmem_limit = int(min(max(vmem_estimate(tile_b) + (4 << 20), 32 << 20),
                         budget))

    out = pl.pallas_call(
        functools.partial(_decoder_kernel, n_linear, compute_dtype),
        out_shape=jax.ShapeDtypeStruct((b_pad, out_p), jnp.float32),
        grid=grid,
        in_specs=in_specs,
        out_specs=pl.BlockSpec((tile_b, out_p), lambda i: (i, 0)),
        compiler_params=pltpu.CompilerParams(
            dimension_semantics=("parallel",),
            vmem_limit_bytes=vmem_limit),
        cost_estimate=pl.CostEstimate(flops=flops, transcendentals=0,
                                      bytes_accessed=bytes_accessed),
    )(*flat_inputs)

    return out[:batch, :out_dim]


def reference_forward(x, params, compute_dtype=jnp.bfloat16):
    """Mirrors the kernel's bf16-dot / f32-accumulate numerics."""
    h = x
    for i, (w, b) in enumerate(params):
        h = jnp.dot(h.astype(compute_dtype), w.astype(compute_dtype),
                    preferred_element_type=jnp.float32)
        h = h + b.astype(jnp.float32)
        if i < len(params) - 1:
            h = jnp.maximum(h, 0.0)
    return h


def init_params(key, latent_dim, out_dim, n_layers, layer_size):
    """Deterministic init mirroring nn.Linear default (uniform +-1/sqrt(fan_in))."""
    dims = [latent_dim] + [layer_size] * n_layers + [out_dim]
    params = []
    for i in range(len(dims) - 1):
        key, kw, kb = jax.random.split(key, 3)
        fan_in = dims[i]
        bound = 1.0 / float(fan_in) ** 0.5
        w = jax.random.uniform(kw, (dims[i], dims[i + 1]), jnp.float32,
                               minval=-bound, maxval=bound)
        b = jax.random.uniform(kb, (dims[i + 1],), jnp.float32,
                               minval=-bound, maxval=bound)
        params.append((w, b))
    return params


if __name__ == "__main__":
    # Small, module-consistent shapes: Decoder(latent_dim, out_dim, n_layers, layer_size)
    batch = 2
    latent_dim = 8
    out_dim = 16
    n_layers = 3
    layer_size = 32

    key = jax.random.PRNGKey(0)
    key, kx, kp = jax.random.split(key, 3)

    x = jax.random.normal(kx, (batch, latent_dim), jnp.float32)
    params = init_params(kp, latent_dim, out_dim, n_layers, layer_size)

    # Pad/cast weights once (outside the jitted forward).
    padded_params = prepare_params(params)
    padded_params = jax.block_until_ready(padded_params)

    out = decoder_forward(x, padded_params, out_dim=out_dim)
    out = jax.block_until_ready(out)

    ref = reference_forward(x, params)
    assert out.shape == (batch, out_dim), out.shape
    assert jnp.allclose(out, ref, atol=1e-2, rtol=1e-2), "mismatch vs reference"

    print("KERNEL_OK")
</pallas_src>

<mosaic_0001>
module attributes {stable_mosaic.version = 11 : i64} {
  func.func @_decoder_kernel(%arg0: i32, %arg1: memref<8x128xbf16, #tpu.memory_space<vmem>>, %arg2: memref<128x128xbf16, #tpu.memory_space<vmem>>, %arg3: memref<1x128xf32, #tpu.memory_space<vmem>>, %arg4: memref<128x128xbf16, #tpu.memory_space<vmem>>, %arg5: memref<1x128xf32, #tpu.memory_space<vmem>>, %arg6: memref<128x128xbf16, #tpu.memory_space<vmem>>, %arg7: memref<1x128xf32, #tpu.memory_space<vmem>>, %arg8: memref<128x128xbf16, #tpu.memory_space<vmem>>, %arg9: memref<1x128xf32, #tpu.memory_space<vmem>>, %arg10: memref<8x128xf32, #tpu.memory_space<vmem>>) attributes {dimension_semantics = [#tpu.dimension_semantics<parallel>], iteration_bounds = array<i64: 1>, scalar_prefetch = 0 : i64, scratch_operands = 0 : i64, tpu.core_type = #tpu.core_type<tc>, window_params = [{transform_indices = @transform_0, window_bounds = array<i64: 8, 128>}, {pipeline_mode = #tpu.pipeline_mode<synchronous>, transform_indices = @transform_1, window_bounds = array<i64: 128, 128>}, {pipeline_mode = #tpu.pipeline_mode<synchronous>, transform_indices = @transform_2, window_bounds = array<i64: 1, 128>}, {pipeline_mode = #tpu.pipeline_mode<synchronous>, transform_indices = @transform_3, window_bounds = array<i64: 128, 128>}, {pipeline_mode = #tpu.pipeline_mode<synchronous>, transform_indices = @transform_4, window_bounds = array<i64: 1, 128>}, {pipeline_mode = #tpu.pipeline_mode<synchronous>, transform_indices = @transform_5, window_bounds = array<i64: 128, 128>}, {pipeline_mode = #tpu.pipeline_mode<synchronous>, transform_indices = @transform_6, window_bounds = array<i64: 1, 128>}, {pipeline_mode = #tpu.pipeline_mode<synchronous>, transform_indices = @transform_7, window_bounds = array<i64: 128, 128>}, {pipeline_mode = #tpu.pipeline_mode<synchronous>, transform_indices = @transform_8, window_bounds = array<i64: 1, 128>}, {transform_indices = @transform_9, window_bounds = array<i64: 8, 128>}]} {
    %c0 = arith.constant 0 : index
    %c0_0 = arith.constant 0 : index
    %0 = vector.load %arg1[%c0, %c0_0] : memref<8x128xbf16, #tpu.memory_space<vmem>>, vector<8x128xbf16>
    %c0_1 = arith.constant 0 : index
    %c0_2 = arith.constant 0 : index
    %1 = vector.load %arg2[%c0_1, %c0_2] : memref<128x128xbf16, #tpu.memory_space<vmem>>, vector<128x128xbf16>
    %c0_3 = arith.constant 0 : index
    %c0_4 = arith.constant 0 : index
    %2 = vector.load %arg3[%c0_3, %c0_4] : memref<1x128xf32, #tpu.memory_space<vmem>>, vector<1x128xf32>
    %cst = arith.constant dense<0.000000e+00> : vector<8x128xf32>
    %3 = tpu.matmul %0, %1, %cst {dimension_numbers = #tpu.dot_dimension_numbers<[1], [0], [0], [1], [0, 0, 1, 1], [], []>} : vector<8x128xbf16>, vector<128x128xbf16>, vector<8x128xf32> -> vector<8x128xf32>
    %4 = vector.broadcast %2 : vector<1x128xf32> to vector<8x128xf32>
    %5 = arith.addf %3, %4 : vector<8x128xf32>
    %cst_5 = arith.constant 0.000000e+00 : f32
    %6 = vector.broadcast %cst_5 : f32 to vector<8x128xf32>
    %7 = arith.maximumf %5, %6 : vector<8x128xf32>
    %8 = arith.truncf %7 : vector<8x128xf32> to vector<8x128xbf16>
    %c0_6 = arith.constant 0 : index
    %c0_7 = arith.constant 0 : index
    %9 = vector.load %arg4[%c0_6, %c0_7] : memref<128x128xbf16, #tpu.memory_space<vmem>>, vector<128x128xbf16>
    %c0_8 = arith.constant 0 : index
    %c0_9 = arith.constant 0 : index
    %10 = vector.load %arg5[%c0_8, %c0_9] : memref<1x128xf32, #tpu.memory_space<vmem>>, vector<1x128xf32>
    %cst_10 = arith.constant dense<0.000000e+00> : vector<8x128xf32>
    %11 = tpu.matmul %8, %9, %cst_10 {dimension_numbers = #tpu.dot_dimension_numbers<[1], [0], [0], [1], [0, 0, 1, 1], [], []>} : vector<8x128xbf16>, vector<128x128xbf16>, vector<8x128xf32> -> vector<8x128xf32>
    %12 = vector.broadcast %10 : vector<1x128xf32> to vector<8x128xf32>
    %13 = arith.addf %11, %12 : vector<8x128xf32>
    %cst_11 = arith.constant 0.000000e+00 : f32
    %14 = vector.broadcast %cst_11 : f32 to vector<8x128xf32>
    %15 = arith.maximumf %13, %14 : vector<8x128xf32>
    %16 = arith.truncf %15 : vector<8x128xf32> to vector<8x128xbf16>
    %c0_12 = arith.constant 0 : index
    %c0_13 = arith.constant 0 : index
    %17 = vector.load %arg6[%c0_12, %c0_13] : memref<128x128xbf16, #tpu.memory_space<vmem>>, vector<128x128xbf16>
    %c0_14 = arith.constant 0 : index
    %c0_15 = arith.constant 0 : index
    %18 = vector.load %arg7[%c0_14, %c0_15] : memref<1x128xf32, #tpu.memory_space<vmem>>, vector<1x128xf32>
    %cst_16 = arith.constant dense<0.000000e+00> : vector<8x128xf32>
    %19 = tpu.matmul %16, %17, %cst_16 {dimension_numbers = #tpu.dot_dimension_numbers<[1], [0], [0], [1], [0, 0, 1, 1], [], []>} : vector<8x128xbf16>, vector<128x128xbf16>, vector<8x128xf32> -> vector<8x128xf32>
    %20 = vector.broadcast %18 : vector<1x128xf32> to vector<8x128xf32>
    %21 = arith.addf %19, %20 : vector<8x128xf32>
    %cst_17 = arith.constant 0.000000e+00 : f32
    %22 = vector.broadcast %cst_17 : f32 to vector<8x128xf32>
    %23 = arith.maximumf %21, %22 : vector<8x128xf32>
    %24 = arith.truncf %23 : vector<8x128xf32> to vector<8x128xbf16>
    %c0_18 = arith.constant 0 : index
    %c0_19 = arith.constant 0 : index
    %25 = vector.load %arg8[%c0_18, %c0_19] : memref<128x128xbf16, #tpu.memory_space<vmem>>, vector<128x128xbf16>
    %c0_20 = arith.constant 0 : index
    %c0_21 = arith.constant 0 : index
    %26 = vector.load %arg9[%c0_20, %c0_21] : memref<1x128xf32, #tpu.memory_space<vmem>>, vector<1x128xf32>
    %cst_22 = arith.constant dense<0.000000e+00> : vector<8x128xf32>
    %27 = tpu.matmul %24, %25, %cst_22 {dimension_numbers = #tpu.dot_dimension_numbers<[1], [0], [0], [1], [0, 0, 1, 1], [], []>} : vector<8x128xbf16>, vector<128x128xbf16>, vector<8x128xf32> -> vector<8x128xf32>
    %28 = vector.broadcast %26 : vector<1x128xf32> to vector<8x128xf32>
    %29 = arith.addf %27, %28 : vector<8x128xf32>
    %c0_23 = arith.constant 0 : index
    %c0_24 = arith.constant 0 : index
    %30 = vector.load %arg10[%c0_23, %c0_24] : memref<8x128xf32, #tpu.memory_space<vmem>>, vector<8x128xf32>
    tpu.vector_store %arg10[%c0_23, %c0_24], %29 {strides = array<i32>} : memref<8x128xf32, #tpu.memory_space<vmem>>, vector<8x128xf32>,
    return
  }
  func.func @transform_0(%arg0: i32) -> (i32, i32) {
    %c0_i32 = arith.constant 0 : i32
    %c0_i32_0 = arith.constant 0 : i32
    return %arg0, %c0_i32 : i32, i32
  }
  func.func @transform_1(%arg0: i32) -> (i32, i32) {
    %c0_i32 = arith.constant 0 : i32
    %c0_i32_0 = arith.constant 0 : i32
    %c0_i32_1 = arith.constant 0 : i32
    return %c0_i32, %c0_i32_0 : i32, i32
  }
  func.func @transform_2(%arg0: i32) -> (i32, i32) {
    %c0_i32 = arith.constant 0 : i32
    %c0_i32_0 = arith.constant 0 : i32
    %c0_i32_1 = arith.constant 0 : i32
    return %c0_i32, %c0_i32_0 : i32, i32
  }
  func.func @transform_3(%arg0: i32) -> (i32, i32) {
    %c0_i32 = arith.constant 0 : i32
    %c0_i32_0 = arith.constant 0 : i32
    %c0_i32_1 = arith.constant 0 : i32
    return %c0_i32, %c0_i32_0 : i32, i32
  }
  func.func @transform_4(%arg0: i32) -> (i32, i32) {
    %c0_i32 = arith.constant 0 : i32
    %c0_i32_0 = arith.constant 0 : i32
    %c0_i32_1 = arith.constant 0 : i32
    return %c0_i32, %c0_i32_0 : i32, i32
  }
  func.func @transform_5(%arg0: i32) -> (i32, i32) {
    %c0_i32 = arith.constant 0 : i32
    %c0_i32_0 = arith.constant 0 : i32
    %c0_i32_1 = arith.constant 0 : i32
    return %c0_i32, %c0_i32_0 : i32, i32
  }
  func.func @transform_6(%arg0: i32) -> (i32, i32) {
    %c0_i32 = arith.constant 0 : i32
    %c0_i32_0 = arith.constant 0 : i32
    %c0_i32_1 = arith.constant 0 : i32
    return %c0_i32, %c0_i32_0 : i32, i32
  }
  func.func @transform_7(%arg0: i32) -> (i32, i32) {
    %c0_i32 = arith.constant 0 : i32
    %c0_i32_0 = arith.constant 0 : i32
    %c0_i32_1 = arith.constant 0 : i32
    return %c0_i32, %c0_i32_0 : i32, i32
  }
  func.func @transform_8(%arg0: i32) -> (i32, i32) {
    %c0_i32 = arith.constant 0 : i32
    %c0_i32_0 = arith.constant 0 : i32
    %c0_i32_1 = arith.constant 0 : i32
    return %c0_i32, %c0_i32_0 : i32, i32
  }
  func.func @transform_9(%arg0: i32) -> (i32, i32) {
    %c0_i32 = arith.constant 0 : i32
    %c0_i32_0 = arith.constant 0 : i32
    return %arg0, %c0_i32 : i32, i32
  }
}

</mosaic_0001>

<llo_original>
// kernel: decoder_forward.1
$region0: #{decoder_forward.1}
  #allocation0 [shape = 'u32[]', space=smem, size = 0x4, offset = 0x4, fixed_abs, tag = 'smem constant byte address 0x4 - core index']
  #allocation1 [shape = 'u32[144,128]{1,0:T(1,128)}', space=vmem, size = 0x12000, scoped, tag = 'internal scratch']
  %s0 = inlined_call_operand.vmem [shape: bf16[8,128], index: 0, kind: input, shape index: {}]
  %s1 = inlined_call_operand.hbm [shape: bf16[128,128], index: 1, kind: input, shape index: {}]
  %s2 = inlined_call_operand.vmem [shape: f32[1,128], index: 2, kind: input, shape index: {}]
  %s3 = inlined_call_operand.hbm [shape: bf16[128,128], index: 3, kind: input, shape index: {}]
  %s4 = inlined_call_operand.vmem [shape: f32[1,128], index: 4, kind: input, shape index: {}]
  %s5 = inlined_call_operand.hbm [shape: bf16[128,128], index: 5, kind: input, shape index: {}]
  %s6 = inlined_call_operand.vmem [shape: f32[1,128], index: 6, kind: input, shape index: {}]
  %s7 = inlined_call_operand.hbm [shape: bf16[128,128], index: 7, kind: input, shape index: {}]
  %s8 = inlined_call_operand.vmem [shape: f32[1,128], index: 8, kind: input, shape index: {}]
  %s9 = inlined_call_operand.vmem [shape: f32[8,128], index: 9, kind: output, shape index: {}]
  %s10 = sld [smem:[#allocation0]]
  $region62: #{decoder_forward.1} parent=0
    _
  %s12 = ssub.s32 1, %s10
  %s13 = scalar_select 0, %s12, %s10
  $region1: #{decoder_forward.1} parent=0
    #allocation2 [shape = 'u8[32768]{0}', space=vmem, size = 0x8000, scoped, tag = 'input window, operand 1, single buffered']
    #allocation3 [shape = 's32[1]{0}', space=sflag, size = 0x4, scoped, tag = 'scoped memory for decoder_forward.1']
    #allocation4 [shape = 'u8[32768]{0}', space=vmem, size = 0x8000, scoped, tag = 'input window, operand 3, single buffered']
    #allocation5 [shape = 's32[1]{0}', space=sflag, size = 0x4, scoped, tag = 'scoped memory for decoder_forward.1']
    #allocation6 [shape = 'u8[32768]{0}', space=vmem, size = 0x8000, scoped, tag = 'input window, operand 5, single buffered']
    #allocation7 [shape = 'u8[32768]{0}', space=vmem, size = 0x8000, scoped, tag = 'input window, operand 7, single buffered']
    #allocation8 [shape = 's32[1]{0}', space=sflag, size = 0x4, scoped, tag = 'scoped memory for decoder_forward.1']
    %14 = vsyncpa [#allocation3], 0
    %15 = vsyncpa [#allocation5], 0
    %16 = vsyncpa [#allocation8], 0
    // Predicated region
    $region2: #{decoder_forward.1} parent=1 // pred_check
      _
    $region3: #{decoder_forward.1} parent=1 // pred_check_branch
      %18 = sbr.rel (0) target = $region5
    $region4: #{decoder_forward.1} parent=1 // pred_region
      _
    $region5: #{decoder_forward.1} parent=1 // pred_fallthru
      _
    // Predicated region
    $region6: #{decoder_forward.1} parent=1 // pred_check
      _
    $region7: #{decoder_forward.1} parent=1 // pred_check_branch
      %20 = sbr.rel (0) target = $region9
    $region8: #{decoder_forward.1} parent=1 // pred_region
      %s22 = ssub.s32 1024, 1024
      %23 = vsyncadd [#allocation3], %s22
      %s24 = sshll.u32 [#allocation2], 4
      %s25 = int_to_ptr.vmem [resolvable:$true] %s24
      %30 = dma.hbm_to_vmem [thread:$0]  %s1, 1024, %s25, [#allocation3], 64, 64, 4
    $region9: #{decoder_forward.1} parent=1 // pred_fallthru
      _
    // Predicated region
    $region10: #{decoder_forward.1} parent=1 // pred_check
      _
    $region11: #{decoder_forward.1} parent=1 // pred_check_branch
      %32 = sbr.rel (0) target = $region13
    $region12: #{decoder_forward.1} parent=1 // pred_region
      _
    $region13: #{decoder_forward.1} parent=1 // pred_fallthru
      _
    // Predicated region
    $region14: #{decoder_forward.1} parent=1 // pred_check
      _
    $region15: #{decoder_forward.1} parent=1 // pred_check_branch
      %34 = sbr.rel (0) target = $region17
    $region16: #{decoder_forward.1} parent=1 // pred_region
      %s36 = ssub.s32 1024, 1024
      %37 = vsyncadd [#allocation5], %s36
      %s38 = sshll.u32 [#allocation4], 4
      %s39 = int_to_ptr.vmem [resolvable:$true] %s38
      %44 = dma.hbm_to_vmem [thread:$0]  %s3, 1024, %s39, [#allocation5], 64, 64, 4
    $region17: #{decoder_forward.1} parent=1 // pred_fallthru
      _
    // Predicated region
    $region18: #{decoder_forward.1} parent=1 // pred_check
      _
    $region19: #{decoder_forward.1} parent=1 // pred_check_branch
      %46 = sbr.rel (0) target = $region21
    $region20: #{decoder_forward.1} parent=1 // pred_region
      _
    $region21: #{decoder_forward.1} parent=1 // pred_fallthru
      _
    // Predicated region
    $region22: #{decoder_forward.1} parent=1 // pred_check
      _
    $region23: #{decoder_forward.1} parent=1 // pred_check_branch
      %48 = sbr.rel (0) target = $region25
    $region24: #{decoder_forward.1} parent=1 // pred_region
      %s50 = ssub.s32 1024, 1024
      %51 = vsyncadd [#allocation5], %s50
      %s52 = sshll.u32 [#allocation6], 4
      %s53 = int_to_ptr.vmem [resolvable:$true] %s52
      %58 = dma.hbm_to_vmem [thread:$0]  %s5, 1024, %s53, [#allocation5], 64, 64, 4
    $region25: #{decoder_forward.1} parent=1 // pred_fallthru
      _
    // Predicated region
    $region26: #{decoder_forward.1} parent=1 // pred_check
      _
    $region27: #{decoder_forward.1} parent=1 // pred_check_branch
      %60 = sbr.rel (0) target = $region29
    $region28: #{decoder_forward.1} parent=1 // pred_region
      _
    $region29: #{decoder_forward.1} parent=1 // pred_fallthru
      _
    // Predicated region
    $region30: #{decoder_forward.1} parent=1 // pred_check
      _
    $region31: #{decoder_forward.1} parent=1 // pred_check_branch
      %62 = sbr.rel (0) target = $region33
    $region32: #{decoder_forward.1} parent=1 // pred_region
      %s64 = ssub.s32 1024, 1024
      %65 = vsyncadd [#allocation8], %s64
      %s66 = sshll.u32 [#allocation7], 4
      %s67 = int_to_ptr.vmem [resolvable:$true] %s66
      %72 = dma.hbm_to_vmem [thread:$0]  %s7, 1024, %s67, [#allocation8], 64, 64, 4
    $region33: #{decoder_forward.1} parent=1 // pred_fallthru
      _
    // Predicated region
    $region34: #{decoder_forward.1} parent=1 // pred_check
      _
    $region35: #{decoder_forward.1} parent=1 // pred_check_branch
      %74 = sbr.rel (0) target = $region37
    $region36: #{decoder_forward.1} parent=1 // pred_region
      _
    $region37: #{decoder_forward.1} parent=1 // pred_fallthru
      _
    // Predicated region
    $region38: #{decoder_forward.1} parent=1 // pred_check
      _
    $region39: #{decoder_forward.1} parent=1 // pred_check_branch
      %76 = sbr.rel (0) target = $region41
    $region40: #{decoder_forward.1} parent=1 // pred_region
      %77 = dma.done [#allocation3], 1024
    $region41: #{decoder_forward.1} parent=1 // pred_fallthru
      _
    // Predicated region
    $region42: #{decoder_forward.1} parent=1 // pred_check
      _
    $region43: #{decoder_forward.1} parent=1 // pred_check_branch
      %79 = sbr.rel (0) target = $region45
    $region44: #{decoder_forward.1} parent=1 // pred_region
      %80 = dma.done [#allocation5], 1024
    $region45: #{decoder_forward.1} parent=1 // pred_fallthru
      _
    // Predicated region
    $region46: #{decoder_forward.1} parent=1 // pred_check
      _
    $region47: #{decoder_forward.1} parent=1 // pred_check_branch
      %82 = sbr.rel (0) target = $region49
    $region48: #{decoder_forward.1} parent=1 // pred_region
      %83 = dma.done [#allocation5], 1024
    $region49: #{decoder_forward.1} parent=1 // pred_fallthru
      _
    // Predicated region
    $region50: #{decoder_forward.1} parent=1 // pred_check
      _
    $region51: #{decoder_forward.1} parent=1 // pred_check_branch
      %85 = sbr.rel (0) target = $region53
    $region52: #{decoder_forward.1} parent=1 // pred_region
      %86 = dma.done [#allocation8], 1024
    $region53: #{decoder_forward.1} parent=1 // pred_fallthru
      _
    %v88 = vld [vmem:[%s0] sm:$0xf]
    %v89 = vld [vmem:[#allocation2] sm:$0xf]
    %v90 = vld [vmem:[#allocation2 + $0x4] sm:$0xf]
    %v91 = vld [vmem:[#allocation2 + $0x8] sm:$0xf]
    %v92 = vld [vmem:[#allocation2 + $0xc] sm:$0xf]
    %v93 = vld [vmem:[#allocation2 + $0x10] sm:$0xf]
    %v94 = vld [vmem:[#allocation2 + $0x14] sm:$0xf]
    %v95 = vld [vmem:[#allocation2 + $0x18] sm:$0xf]
    %v96 = vld [vmem:[#allocation2 + $0x1c] sm:$0xf]
    %v97 = vld [vmem:[#allocation2 + $0x20] sm:$0xf]
    %v98 = vld [vmem:[#allocation2 + $0x24] sm:$0xf]
    %v99 = vld [vmem:[#allocation2 + $0x28] sm:$0xf]
    %v100 = vld [vmem:[#allocation2 + $0x2c] sm:$0xf]
    %v101 = vld [vmem:[#allocation2 + $0x30] sm:$0xf]
    %v102 = vld [vmem:[#allocation2 + $0x34] sm:$0xf]
    %v103 = vld [vmem:[#allocation2 + $0x38] sm:$0xf]
    %v104 = vld [vmem:[#allocation2 + $0x3c] sm:$0xf]
    %v105 = vld [vmem:[%s2] sm:$0x1]
    %v107 = vlaneseq
    %v108 = vshrl.u32 %v107, 7
    %v109 = vsub.s32 0, %v108
    %v110 = vrot.slane %v105, %v109
    %v128 = vunpack.c.l.b16 %v89
    %v129 = vunpack.c.l.b16 %v90
    %v130 = vunpack.c.l.b16 %v91
    %v131 = vunpack.c.l.b16 %v92
    %v132 = vunpack.c.l.b16 %v93
    %v133 = vunpack.c.l.b16 %v94
    %v134 = vunpack.c.l.b16 %v95
    %v135 = vunpack.c.l.b16 %v96
    %v136 = vunpack.c.l.b16 %v97
    %v137 = vunpack.c.l.b16 %v98
    %v138 = vunpack.c.l.b16 %v99
    %v139 = vunpack.c.l.b16 %v100
    %v140 = vunpack.c.l.b16 %v101
    %v141 = vunpack.c.l.b16 %v102
    %v142 = vunpack.c.l.b16 %v103
    %v143 = vunpack.c.l.b16 %v104
    %v144 = vpack.c.b16 %v129, %v128
    %v145 = vpack.c.b16 %v131, %v130
    %v146 = vpack.c.b16 %v133, %v132
    %v147 = vpack.c.b16 %v135, %v134
    %v148 = vpack.c.b16 %v137, %v136
    %v149 = vpack.c.b16 %v139, %v138
    %v150 = vpack.c.b16 %v141, %v140
    %v151 = vpack.c.b16 %v143, %v142
    %160 = vmatprep.subr.bf16.mxu0 0
    %161 = vmatpush1.bf16.msra.mxu0 %v144
    %162 = vmatprep.subr.bf16.mxu0 0
    %163 = vmatpush1.bf16.msra.mxu0 %v145
    %164 = vmatprep.subr.bf16.mxu0 0
    %165 = vmatpush1.bf16.msra.mxu0 %v146
    %166 = vmatprep.subr.bf16.mxu0 0
    %167 = vmatpush1.bf16.msra.mxu0 %v147
    %168 = vmatprep.subr.bf16.mxu0 0
    %169 = vmatpush1.bf16.msra.mxu0 %v148
    %170 = vmatprep.subr.bf16.mxu0 0
    %171 = vmatpush1.bf16.msra.mxu0 %v149
    %172 = vmatprep.subr.bf16.mxu0 0
    %173 = vmatpush1.bf16.msra.mxu0 %v150
    %174 = vmatprep.subr.bf16.mxu0 0
    %175 = vmatpush1.bf16.msra.mxu0 %v151
    %176 = vmatprep.subr.bf16.mxu0 0
    %177 = vmatpush1.bf16.msra.mxu0 0
    %178 = vmatprep.subr.bf16.mxu0 0
    %179 = vmatpush1.bf16.msra.mxu0 0
    %180 = vmatprep.subr.bf16.mxu0 0
    %181 = vmatpush1.bf16.msra.mxu0 0
    %182 = vmatprep.subr.bf16.mxu0 0
    %183 = vmatpush1.bf16.msra.mxu0 0
    %184 = vmatprep.subr.bf16.mxu0 0
    %185 = vmatpush1.bf16.msra.mxu0 0
    %186 = vmatprep.subr.bf16.mxu0 0
    %187 = vmatpush1.bf16.msra.mxu0 0
    %188 = vmatprep.subr.bf16.mxu0 0
    %189 = vmatpush1.bf16.msra.mxu0 0
    %190 = vmatprep.subr.bf16.mxu0 0
    %191 = vmatpush1.bf16.msra.mxu0 0
    %192 = vmatprep.mubr.bf16.mxu0 0
    %193 = vmatmul.mubr.bf16.gmra.mrb[0].mxu0 %v88
    %v194 = vpop.f32.mrb[0].mxu0
    %v195 = vadd.f32 %v110, %v194
    %v196 = vpop.f32.mrb[0].mxu0
    %v197 = vpop.f32.mrb[0].mxu0
    %v198 = vpop.f32.mrb[0].mxu0
    %199 = vdwg.mxu0
    %v200 = vmax.f32 %v195, 0.0
    %v201 = vpack.c.bf16 %v200, %v200
    %v202 = vld [vmem:[#allocation4] sm:$0xf]
    %v203 = vld [vmem:[#allocation4 + $0x4] sm:$0xf]
    %v204 = vld [vmem:[#allocation4 + $0x8] sm:$0xf]
    %v205 = vld [vmem:[#allocation4 + $0xc] sm:$0xf]
    %v206 = vld [vmem:[#allocation4 + $0x10] sm:$0xf]
    %v207 = vld [vmem:[#allocation4 + $0x14] sm:$0xf]
    %v208 = vld [vmem:[#allocation4 + $0x18] sm:$0xf]
    %v209 = vld [vmem:[#allocation4 + $0x1c] sm:$0xf]
    %v210 = vld [vmem:[#allocation4 + $0x20] sm:$0xf]
    %v211 = vld [vmem:[#allocation4 + $0x24] sm:$0xf]
    %v212 = vld [vmem:[#allocation4 + $0x28] sm:$0xf]
    %v213 = vld [vmem:[#allocation4 + $0x2c] sm:$0xf]
    %v214 = vld [vmem:[#allocation4 + $0x30] sm:$0xf]
    %v215 = vld [vmem:[#allocation4 + $0x34] sm:$0xf]
    %v216 = vld [vmem:[#allocation4 + $0x38] sm:$0xf]
    %v217 = vld [vmem:[#allocation4 + $0x3c] sm:$0xf]
    %v218 = vld [vmem:[%s4] sm:$0x1]
    %v220 = vlaneseq
    %v221 = vshrl.u32 %v220, 7
    %v222 = vsub.s32 0, %v221
    %v223 = vrot.slane %v218, %v222
    %v241 = vunpack.c.l.b16 %v202
    %v242 = vunpack.c.l.b16 %v203
    %v243 = vunpack.c.l.b16 %v204
    %v244 = vunpack.c.l.b16 %v205
    %v245 = vunpack.c.l.b16 %v206
    %v246 = vunpack.c.l.b16 %v207
    %v247 = vunpack.c.l.b16 %v208
    %v248 = vunpack.c.l.b16 %v209
    %v249 = vunpack.c.l.b16 %v210
    %v250 = vunpack.c.l.b16 %v211
    %v251 = vunpack.c.l.b16 %v212
    %v252 = vunpack.c.l.b16 %v213
    %v253 = vunpack.c.l.b16 %v214
    %v254 = vunpack.c.l.b16 %v215
    %v255 = vunpack.c.l.b16 %v216
    %v256 = vunpack.c.l.b16 %v217
    %v257 = vpack.c.b16 %v242, %v241
    %v258 = vpack.c.b16 %v244, %v243
    %v259 = vpack.c.b16 %v246, %v245
    %v260 = vpack.c.b16 %v248, %v247
    %v261 = vpack.c.b16 %v250, %v249
    %v262 = vpack.c.b16 %v252, %v251
    %v263 = vpack.c.b16 %v254, %v253
    %v264 = vpack.c.b16 %v256, %v255
    %273 = vmatprep.subr.bf16.mxu0 0
    %274 = vmatpush1.bf16.msra.mxu0 %v257
    %275 = vmatprep.subr.bf16.mxu0 0
    %276 = vmatpush1.bf16.msra.mxu0 %v258
    %277 = vmatprep.subr.bf16.mxu0 0
    %278 = vmatpush1.bf16.msra.mxu0 %v259
    %279 = vmatprep.subr.bf16.mxu0 0
    %280 = vmatpush1.bf16.msra.mxu0 %v260
    %281 = vmatprep.subr.bf16.mxu0 0
    %282 = vmatpush1.bf16.msra.mxu0 %v261
    %283 = vmatprep.subr.bf16.mxu0 0
    %284 = vmatpush1.bf16.msra.mxu0 %v262
    %285 = vmatprep.subr.bf16.mxu0 0
    %286 = vmatpush1.bf16.msra.mxu0 %v263
    %287 = vmatprep.subr.bf16.mxu0 0
    %288 = vmatpush1.bf16.msra.mxu0 %v264
    %289 = vmatprep.subr.bf16.mxu0 0
    %290 = vmatpush1.bf16.msra.mxu0 0
    %291 = vmatprep.subr.bf16.mxu0 0
    %292 = vmatpush1.bf16.msra.mxu0 0
    %293 = vmatprep.subr.bf16.mxu0 0
    %294 = vmatpush1.bf16.msra.mxu0 0
    %295 = vmatprep.subr.bf16.mxu0 0
    %296 = vmatpush1.bf16.msra.mxu0 0
    %297 = vmatprep.subr.bf16.mxu0 0
    %298 = vmatpush1.bf16.msra.mxu0 0
    %299 = vmatprep.subr.bf16.mxu0 0
    %300 = vmatpush1.bf16.msra.mxu0 0
    %301 = vmatprep.subr.bf16.mxu0 0
    %302 = vmatpush1.bf16.msra.mxu0 0
    %303 = vmatprep.subr.bf16.mxu0 0
    %304 = vmatpush1.bf16.msra.mxu0 0
    %305 = vmatprep.mubr.bf16.mxu0 0
    %306 = vmatmul.mubr.bf16.gmra.mrb[0].mxu0 %v201
    %v307 = vpop.f32.mrb[0].mxu0
    %v308 = vadd.f32 %v223, %v307
    %v309 = vpop.f32.mrb[0].mxu0
    %v310 = vpop.f32.mrb[0].mxu0
    %v311 = vpop.f32.mrb[0].mxu0
    %312 = vdwg.mxu0
    %v313 = vmax.f32 %v308, 0.0
    %v314 = vpack.c.bf16 %v313, %v313
    %v315 = vld [vmem:[#allocation6] sm:$0xf]
    %v316 = vld [vmem:[#allocation6 + $0x4] sm:$0xf]
    %v317 = vld [vmem:[#allocation6 + $0x8] sm:$0xf]
    %v318 = vld [vmem:[#allocation6 + $0xc] sm:$0xf]
    %v319 = vld [vmem:[#allocation6 + $0x10] sm:$0xf]
    %v320 = vld [vmem:[#allocation6 + $0x14] sm:$0xf]
    %v321 = vld [vmem:[#allocation6 + $0x18] sm:$0xf]
    %v322 = vld [vmem:[#allocation6 + $0x1c] sm:$0xf]
    %v323 = vld [vmem:[#allocation6 + $0x20] sm:$0xf]
    %v324 = vld [vmem:[#allocation6 + $0x24] sm:$0xf]
    %v325 = vld [vmem:[#allocation6 + $0x28] sm:$0xf]
    %v326 = vld [vmem:[#allocation6 + $0x2c] sm:$0xf]
    %v327 = vld [vmem:[#allocation6 + $0x30] sm:$0xf]
    %v328 = vld [vmem:[#allocation6 + $0x34] sm:$0xf]
    %v329 = vld [vmem:[#allocation6 + $0x38] sm:$0xf]
    %v330 = vld [vmem:[#allocation6 + $0x3c] sm:$0xf]
    %v331 = vld [vmem:[%s6] sm:$0x1]
    %v333 = vlaneseq
    %v334 = vshrl.u32 %v333, 7
    %v335 = vsub.s32 0, %v334
    %v336 = vrot.slane %v331, %v335
    %v354 = vunpack.c.l.b16 %v315
    %v355 = vunpack.c.l.b16 %v316
    %v356 = vunpack.c.l.b16 %v317
    %v357 = vunpack.c.l.b16 %v318
    %v358 = vunpack.c.l.b16 %v319
    %v359 = vunpack.c.l.b16 %v320
    %v360 = vunpack.c.l.b16 %v321
    %v361 = vunpack.c.l.b16 %v322
    %v362 = vunpack.c.l.b16 %v323
    %v363 = vunpack.c.l.b16 %v324
    %v364 = vunpack.c.l.b16 %v325
    %v365 = vunpack.c.l.b16 %v326
    %v366 = vunpack.c.l.b16 %v327
    %v367 = vunpack.c.l.b16 %v328
    %v368 = vunpack.c.l.b16 %v329
    %v369 = vunpack.c.l.b16 %v330
    %v370 = vpack.c.b16 %v355, %v354
    %v371 = vpack.c.b16 %v357, %v356
    %v372 = vpack.c.b16 %v359, %v358
    %v373 = vpack.c.b16 %v361, %v360
    %v374 = vpack.c.b16 %v363, %v362
    %v375 = vpack.c.b16 %v365, %v364
    %v376 = vpack.c.b16 %v367, %v366
    %v377 = vpack.c.b16 %v369, %v368
    %386 = vmatprep.subr.bf16.mxu0 0
    %387 = vmatpush1.bf16.msra.mxu0 %v370
    %388 = vmatprep.subr.bf16.mxu0 0
    %389 = vmatpush1.bf16.msra.mxu0 %v371
    %390 = vmatprep.subr.bf16.mxu0 0
    %391 = vmatpush1.bf16.msra.mxu0 %v372
    %392 = vmatprep.subr.bf16.mxu0 0
    %393 = vmatpush1.bf16.msra.mxu0 %v373
    %394 = vmatprep.subr.bf16.mxu0 0
    %395 = vmatpush1.bf16.msra.mxu0 %v374
    %396 = vmatprep.subr.bf16.mxu0 0
    %397 = vmatpush1.bf16.msra.mxu0 %v375
    %398 = vmatprep.subr.bf16.mxu0 0
    %399 = vmatpush1.bf16.msra.mxu0 %v376
    %400 = vmatprep.subr.bf16.mxu0 0
    %401 = vmatpush1.bf16.msra.mxu0 %v377
    %402 = vmatprep.subr.bf16.mxu0 0
    %403 = vmatpush1.bf16.msra.mxu0 0
    %404 = vmatprep.subr.bf16.mxu0 0
    %405 = vmatpush1.bf16.msra.mxu0 0
    %406 = vmatprep.subr.bf16.mxu0 0
    %407 = vmatpush1.bf16.msra.mxu0 0
    %408 = vmatprep.subr.bf16.mxu0 0
    %409 = vmatpush1.bf16.msra.mxu0 0
    %410 = vmatprep.subr.bf16.mxu0 0
    %411 = vmatpush1.bf16.msra.mxu0 0
    %412 = vmatprep.subr.bf16.mxu0 0
    %413 = vmatpush1.bf16.msra.mxu0 0
    %414 = vmatprep.subr.bf16.mxu0 0
    %415 = vmatpush1.bf16.msra.mxu0 0
    %416 = vmatprep.subr.bf16.mxu0 0
    %417 = vmatpush1.bf16.msra.mxu0 0
    %418 = vmatprep.mubr.bf16.mxu0 0
    %419 = vmatmul.mubr.bf16.gmra.mrb[0].mxu0 %v314
    %v420 = vpop.f32.mrb[0].mxu0
    %v421 = vadd.f32 %v336, %v420
    %v422 = vpop.f32.mrb[0].mxu0
    %v423 = vpop.f32.mrb[0].mxu0
    %v424 = vpop.f32.mrb[0].mxu0
    %425 = vdwg.mxu0
    %v426 = vmax.f32 %v421, 0.0
    %v427 = vpack.c.bf16 %v426, %v426
    %v428 = vld [vmem:[#allocation7] sm:$0xf]
    %v429 = vld [vmem:[#allocation7 + $0x4] sm:$0xf]
    %v430 = vld [vmem:[#allocation7 + $0x8] sm:$0xf]
    %v431 = vld [vmem:[#allocation7 + $0xc] sm:$0xf]
    %v432 = vld [vmem:[#allocation7 + $0x10] sm:$0xf]
    %v433 = vld [vmem:[#allocation7 + $0x14] sm:$0xf]
    %v434 = vld [vmem:[#allocation7 + $0x18] sm:$0xf]
    %v435 = vld [vmem:[#allocation7 + $0x1c] sm:$0xf]
    %v436 = vld [vmem:[#allocation7 + $0x20] sm:$0xf]
    %v437 = vld [vmem:[#allocation7 + $0x24] sm:$0xf]
    %v438 = vld [vmem:[#allocation7 + $0x28] sm:$0xf]
    %v439 = vld [vmem:[#allocation7 + $0x2c] sm:$0xf]
    %v440 = vld [vmem:[#allocation7 + $0x30] sm:$0xf]
    %v441 = vld [vmem:[#allocation7 + $0x34] sm:$0xf]
    %v442 = vld [vmem:[#allocation7 + $0x38] sm:$0xf]
    %v443 = vld [vmem:[#allocation7 + $0x3c] sm:$0xf]
    %v444 = vld [vmem:[%s8] sm:$0x1]
    %v446 = vlaneseq
    %v447 = vshrl.u32 %v446, 7
    %v448 = vsub.s32 0, %v447
    %v449 = vrot.slane %v444, %v448
    %v467 = vunpack.c.l.b16 %v428
    %v468 = vunpack.c.l.b16 %v429
    %v469 = vunpack.c.l.b16 %v430
    %v470 = vunpack.c.l.b16 %v431
    %v471 = vunpack.c.l.b16 %v432
    %v472 = vunpack.c.l.b16 %v433
    %v473 = vunpack.c.l.b16 %v434
    %v474 = vunpack.c.l.b16 %v435
    %v475 = vunpack.c.l.b16 %v436
    %v476 = vunpack.c.l.b16 %v437
    %v477 = vunpack.c.l.b16 %v438
    %v478 = vunpack.c.l.b16 %v439
    %v479 = vunpack.c.l.b16 %v440
    %v480 = vunpack.c.l.b16 %v441
    %v481 = vunpack.c.l.b16 %v442
    %v482 = vunpack.c.l.b16 %v443
    %v483 = vpack.c.b16 %v468, %v467
    %v484 = vpack.c.b16 %v470, %v469
    %v485 = vpack.c.b16 %v472, %v471
    %v486 = vpack.c.b16 %v474, %v473
    %v487 = vpack.c.b16 %v476, %v475
    %v488 = vpack.c.b16 %v478, %v477
    %v489 = vpack.c.b16 %v480, %v479
    %v490 = vpack.c.b16 %v482, %v481
    %499 = vmatprep.subr.bf16.mxu0 0
    %500 = vmatpush1.bf16.msra.mxu0 %v483
    %501 = vmatprep.subr.bf16.mxu0 0
    %502 = vmatpush1.bf16.msra.mxu0 %v484
    %503 = vmatprep.subr.bf16.mxu0 0
    %504 = vmatpush1.bf16.msra.mxu0 %v485
    %505 = vmatprep.subr.bf16.mxu0 0
    %506 = vmatpush1.bf16.msra.mxu0 %v486
    %507 = vmatprep.subr.bf16.mxu0 0
    %508 = vmatpush1.bf16.msra.mxu0 %v487
    %509 = vmatprep.subr.bf16.mxu0 0
    %510 = vmatpush1.bf16.msra.mxu0 %v488
    %511 = vmatprep.subr.bf16.mxu0 0
    %512 = vmatpush1.bf16.msra.mxu0 %v489
    %513 = vmatprep.subr.bf16.mxu0 0
    %514 = vmatpush1.bf16.msra.mxu0 %v490
    %515 = vmatprep.subr.bf16.mxu0 0
    %516 = vmatpush1.bf16.msra.mxu0 0
    %517 = vmatprep.subr.bf16.mxu0 0
    %518 = vmatpush1.bf16.msra.mxu0 0
    %519 = vmatprep.subr.bf16.mxu0 0
    %520 = vmatpush1.bf16.msra.mxu0 0
    %521 = vmatprep.subr.bf16.mxu0 0
    %522 = vmatpush1.bf16.msra.mxu0 0
    %523 = vmatprep.subr.bf16.mxu0 0
    %524 = vmatpush1.bf16.msra.mxu0 0
    %525 = vmatprep.subr.bf16.mxu0 0
    %526 = vmatpush1.bf16.msra.mxu0 0
    %527 = vmatprep.subr.bf16.mxu0 0
    %528 = vmatpush1.bf16.msra.mxu0 0
    %529 = vmatprep.subr.bf16.mxu0 0
    %530 = vmatpush1.bf16.msra.mxu0 0
    %531 = vmatprep.mubr.bf16.mxu0 0
    %532 = vmatmul.mubr.bf16.gmra.mrb[0].mxu0 %v427
    %v533 = vpop.f32.mrb[0].mxu0
    %v534 = vadd.f32 %v449, %v533
    %v535 = vpop.f32.mrb[0].mxu0
    %v536 = vpop.f32.mrb[0].mxu0
    %v537 = vpop.f32.mrb[0].mxu0
    %538 = vdwg.mxu0
    %539 = vst [vmem:[%s9] sm:$0xff] %v534
    // Predicated region
    $region54: #{decoder_forward.1} parent=1 // pred_check
      _
    $region55: #{decoder_forward.1} parent=1 // pred_check_branch
      %541 = sbr.rel (0) target = $region57
    $region56: #{decoder_forward.1} parent=1 // pred_region
      _
    $region57: #{decoder_forward.1} parent=1 // pred_fallthru
      _
    // Predicated region
    $region58: #{decoder_forward.1} parent=1 // pred_check
      _
    $region59: #{decoder_forward.1} parent=1 // pred_check_branch
      %543 = sbr.rel (0) target = $region61
    $region60: #{decoder_forward.1} parent=1 // pred_region
      _
    $region61: #{decoder_forward.1} parent=1 // pred_fallthru
      _
    %544 = vsyncpa [#allocation3], 1
    %545 = vsyncpa [#allocation5], 1
    %546 = vsyncpa [#allocation8], 1

</llo_original>
